<compile_context>
chip_gen: v5e
topology: v5e:2x2
jax: 0.10.0
libtpu: 0.0.40
codegen_flags: <defaults>
</compile_context>

<pallas_src>
import functools
import math

import jax
import jax.numpy as jnp
from jax.experimental import pallas as pl
from jax.experimental.pallas import tpu as pltpu


# ---------------------------------------------------------------------------
# helpers
# ---------------------------------------------------------------------------
def _round_up(x, m):
    return ((x + m - 1) // m) * m


def _pick_tile(dim, target, align):
    """Pad `dim` to a multiple of `align`, pick tile=min(target, padded), then
    pad again so the tile divides the padded extent."""
    padded = _round_up(max(dim, 1), align)
    tile = min(target, padded)
    padded = _round_up(padded, tile)
    return padded, tile


def _mxu_has_int8():
    """v5e/v6e MXUs run int8 natively; v7x (and unknown chips) use the bf16
    path, which is bit-exact for integer magnitudes <= 127."""
    try:
        kind = jax.devices()[0].device_kind.lower()
    except Exception:
        return False
    return ("v5" in kind) or ("v6" in kind)


# ---------------------------------------------------------------------------
# Kernel 1: per-row activation quantization (gemm_calc_scale + gemm_round)
# ---------------------------------------------------------------------------
def _act_quant_kernel(x_ref, q_ref, sx_ref):
    # x_ref : (tm, K) f32   q_ref : (tm, K) int8|bf16   sx_ref : (tm, 1) f32
    x = x_ref[...]
    absmax = jnp.max(jnp.abs(x), axis=-1, keepdims=True)          # (tm, 1)
    safe = jnp.where(absmax > 0.0, absmax, 1.0)                   # zero-row guard
    inv = 127.0 / safe                                            # one divide / row
    q_ref[...] = jnp.round(x * inv).astype(q_ref.dtype)
    sx_ref[...] = absmax * (1.0 / 127.0)                          # scale (0 for zero rows)


# ---------------------------------------------------------------------------
# Kernel 2: tiled quantized GEMM + rescale epilogue (gemm_int8 + gemm_scale)
# ---------------------------------------------------------------------------
def _qgemm_kernel(q_ref, wq_ref, sx_ref, wsc_ref, b_ref, o_ref, acc_ref, *,
                  use_int8):
    # q_ref  : (tm, tk) int8|bf16      wq_ref : (tk, tn) int8
    # sx_ref : (tm, 1)  f32            wsc_ref/b_ref : (1, tn) f32
    # o_ref  : (tm, tn) f32            acc_ref : (tm, tn) int32|f32
    k = pl.program_id(2)

    @pl.when(k == 0)
    def _init():
        acc_ref[...] = jnp.zeros_like(acc_ref)

    if use_int8:
        # int8 x int8 -> int32 on the MXU (v5e/v6e); exact for any K.
        acc_ref[...] += jax.lax.dot_general(
            q_ref[...], wq_ref[...],
            dimension_numbers=(((1,), (0,)), ((), ())),
            preferred_element_type=jnp.int32)
    else:
        # bf16 x bf16 -> f32 (v7x has no integer MXU); exact for |q| <= 127.
        acc_ref[...] += jax.lax.dot_general(
            q_ref[...].astype(jnp.bfloat16), wq_ref[...].astype(jnp.bfloat16),
            dimension_numbers=(((1,), (0,)), ((), ())),
            preferred_element_type=jnp.float32)

    @pl.when(k == pl.num_programs(2) - 1)
    def _epilogue():
        out = acc_ref[...].astype(jnp.float32) * sx_ref[...] * wsc_ref[...]
        out = out + b_ref[...]
        o_ref[...] = out.astype(o_ref.dtype)


# ---------------------------------------------------------------------------
# wrapper
# ---------------------------------------------------------------------------
def quantized_linear(x, weight_quant, weight_scale, bias=None, *,
                     tm=128, tn=256, tk=512, use_int8=None):
    """x: (..., K) float, weight_quant: (N, K) int8, weight_scale: (N,) float,
    bias: (N,) float or None  ->  (..., N) in x.dtype."""
    if use_int8 is None:
        use_int8 = _mxu_has_int8()

    orig_dtype = x.dtype
    *lead, K = x.shape
    N, K_w = weight_quant.shape
    assert K == K_w, "in_features mismatch"
    M = math.prod(lead) if lead else 1

    # --- tile selection + padding (ragged M/N/K supported via zero padding) --
    M_pad, tm = _pick_tile(M, tm, 32)     # 32-sublane aligned (int8 native)
    N_pad, tn = _pick_tile(N, tn, 128)    # lane-dense output tiles
    K_pad, tk = _pick_tile(K, tk, 128)

    x2 = x.reshape(M, K).astype(jnp.float32)
    x2 = jnp.pad(x2, ((0, M_pad - M), (0, K_pad - K)))
    wq = jnp.pad(weight_quant, ((0, N_pad - N), (0, K_pad - K)))
    wq_t = wq.T                                            # (K_pad, N_pad) int8
    wsc = jnp.pad(weight_scale.astype(jnp.float32), (0, N_pad - N)).reshape(1, N_pad)
    b = bias if bias is not None else jnp.zeros((N,), jnp.float32)
    b2 = jnp.pad(b.astype(jnp.float32), (0, N_pad - N)).reshape(1, N_pad)

    q_dtype = jnp.int8 if use_int8 else jnp.bfloat16
    acc_dtype = jnp.int32 if use_int8 else jnp.float32

    # ---- step 1: quantize activations once per row -------------------------
    q_x, scale_x = pl.pallas_call(
        _act_quant_kernel,
        out_shape=(jax.ShapeDtypeStruct((M_pad, K_pad), q_dtype),
                   jax.ShapeDtypeStruct((M_pad, 1), jnp.float32)),
        grid_spec=pltpu.PrefetchScalarGridSpec(
            num_scalar_prefetch=0,
            grid=(M_pad // tm,),
            in_specs=[pl.BlockSpec((tm, K_pad), lambda i: (i, 0))],
            out_specs=(pl.BlockSpec((tm, K_pad), lambda i: (i, 0)),
                       pl.BlockSpec((tm, 1), lambda i: (i, 0))),
        ),
        compiler_params=pltpu.CompilerParams(
            dimension_semantics=("parallel",),
            vmem_limit_bytes=32 * 1024 * 1024),
    )(x2)

    # ---- step 2: tiled quantized GEMM + rescale -----------------------------
    out = pl.pallas_call(
        functools.partial(_qgemm_kernel, use_int8=use_int8),
        out_shape=jax.ShapeDtypeStruct((M_pad, N_pad), jnp.float32),
        grid_spec=pltpu.PrefetchScalarGridSpec(
            num_scalar_prefetch=0,
            grid=(M_pad // tm, N_pad // tn, K_pad // tk),
            in_specs=[
                pl.BlockSpec((tm, tk), lambda i, j, k: (i, k)),   # q_x tile
                pl.BlockSpec((tk, tn), lambda i, j, k: (k, j)),   # int8 weight tile
                pl.BlockSpec((tm, 1),  lambda i, j, k: (i, 0)),   # per-row scale
                pl.BlockSpec((1, tn),  lambda i, j, k: (0, j)),   # weight scale
                pl.BlockSpec((1, tn),  lambda i, j, k: (0, j)),   # bias
            ],
            out_specs=pl.BlockSpec((tm, tn), lambda i, j, k: (i, j)),
            scratch_shapes=[pltpu.VMEM((tm, tn), acc_dtype)],
        ),
        compiler_params=pltpu.CompilerParams(
            dimension_semantics=("parallel", "parallel", "arbitrary"),
            vmem_limit_bytes=32 * 1024 * 1024),
    )(q_x, wq_t, scale_x, wsc, b2)

    out = out[:M, :N].reshape(*lead, N)
    return out.astype(orig_dtype)


def make_quantized_params(key, in_features, out_features):
    """Mimics QuantizedLinear.__init__: quantize a float Linear weight."""
    kw, kb = jax.random.split(key)
    w = jax.random.normal(kw, (out_features, in_features), jnp.float32) * 0.05
    bias = jax.random.normal(kb, (out_features,), jnp.float32) * 0.01
    weight_scale = jnp.max(jnp.abs(w), axis=-1) / 127.0               # (N,)
    weight_quant = jnp.round(w / weight_scale[:, None]).astype(jnp.int8)
    return weight_quant, weight_scale, bias


# TODO(synk): backward pass (OpLinear.backward, gemm_scale_round) is not
# implemented — forward inference only.

if __name__ == "__main__":
    key = jax.random.PRNGKey(0)
    k_x, k_p = jax.random.split(key)

    batch, seq, in_features, out_features = 2, 8, 256, 384
    x = jax.random.normal(k_x, (batch, seq, in_features), jnp.float32)
    weight_quant, weight_scale, bias = make_quantized_params(
        k_p, in_features, out_features)

    out = quantized_linear(x, weight_quant, weight_scale, bias)
    jax.block_until_ready(out)

    # pure-JAX reference of the same quantized math (bminf forward)
    x2d = x.reshape(-1, in_features)
    scale_x = jnp.max(jnp.abs(x2d), axis=-1, keepdims=True) / 127.0
    q_x = jnp.round(x2d / scale_x)
    ref = q_x @ weight_quant.T.astype(jnp.float32)
    ref = ref * scale_x * weight_scale[None, :] + bias[None, :]
    ref = ref.reshape(batch, seq, out_features)

    assert out.shape == (batch, seq, out_features)
    assert jnp.allclose(out, ref, atol=1e-2, rtol=1e-3), (
        float(jnp.max(jnp.abs(out - ref))))

    print("KERNEL_OK")
</pallas_src>

<mosaic_0001>
module attributes {stable_mosaic.version = 11 : i64} {
  func.func @_act_quant_kernel(%arg0: i32, %arg1: memref<32x256xf32, #tpu.memory_space<vmem>>, %arg2: memref<32x256xbf16, #tpu.memory_space<vmem>>, %arg3: memref<32x1xf32, #tpu.memory_space<vmem>>) attributes {dimension_semantics = [#tpu.dimension_semantics<parallel>], iteration_bounds = array<i64: 1>, scalar_prefetch = 0 : i64, scratch_operands = 0 : i64, tpu.core_type = #tpu.core_type<tc>, window_params = [{transform_indices = @transform_0, window_bounds = array<i64: 32, 256>}, {transform_indices = @transform_1, window_bounds = array<i64: 32, 256>}, {transform_indices = @transform_2, window_bounds = array<i64: 32, 1>}]} {
    %c0 = arith.constant 0 : index
    %c0_0 = arith.constant 0 : index
    %0 = vector.load %arg1[%c0, %c0_0] : memref<32x256xf32, #tpu.memory_space<vmem>>, vector<32x256xf32>
    %1 = math.absf %0 : vector<32x256xf32>
    %cst = arith.constant dense<0xFF800000> : vector<32xf32>
    %2 = vector.multi_reduction <maximumf>, %1, %cst [1] : vector<32x256xf32> to vector<32xf32>
    %3 = vector.shape_cast %2 : vector<32xf32> to vector<32x1xf32>
    %cst_1 = arith.constant 0.000000e+00 : f32
    %4 = vector.broadcast %cst_1 : f32 to vector<32x1xf32>
    %5 = arith.cmpf ogt, %3, %4 : vector<32x1xf32>
    %cst_2 = arith.constant 1.000000e+00 : f32
    %6 = vector.broadcast %cst_2 : f32 to vector<32x1xf32>
    %7 = arith.select %5, %3, %6 : vector<32x1xi1>, vector<32x1xf32>
    %cst_3 = arith.constant 1.270000e+02 : f32
    %8 = vector.broadcast %cst_3 : f32 to vector<32x1xf32>
    %9 = arith.divf %8, %7 : vector<32x1xf32>
    %10 = vector.broadcast %9 : vector<32x1xf32> to vector<32x256xf32>
    %11 = arith.mulf %0, %10 : vector<32x256xf32>
    %12 = math.roundeven %11 : vector<32x256xf32>
    %13 = arith.truncf %12 : vector<32x256xf32> to vector<32x256xbf16>
    %c0_4 = arith.constant 0 : index
    %c0_5 = arith.constant 0 : index
    %14 = vector.load %arg2[%c0_4, %c0_5] : memref<32x256xbf16, #tpu.memory_space<vmem>>, vector<32x256xbf16>
    tpu.vector_store %arg2[%c0_4, %c0_5], %13 {strides = array<i32>} : memref<32x256xbf16, #tpu.memory_space<vmem>>, vector<32x256xbf16>,
    %cst_6 = arith.constant 0.00787401571 : f32
    %15 = vector.broadcast %cst_6 : f32 to vector<32x1xf32>
    %16 = arith.mulf %3, %15 : vector<32x1xf32>
    %c0_7 = arith.constant 0 : index
    %c0_8 = arith.constant 0 : index
    %17 = vector.load %arg3[%c0_7, %c0_8] : memref<32x1xf32, #tpu.memory_space<vmem>>, vector<32x1xf32>
    tpu.vector_store %arg3[%c0_7, %c0_8], %16 {strides = array<i32>} : memref<32x1xf32, #tpu.memory_space<vmem>>, vector<32x1xf32>,
    return
  }
  func.func @transform_0(%arg0: i32) -> (i32, i32) {
    %c0_i32 = arith.constant 0 : i32
    %c0_i32_0 = arith.constant 0 : i32
    return %arg0, %c0_i32 : i32, i32
  }
  func.func @transform_1(%arg0: i32) -> (i32, i32) {
    %c0_i32 = arith.constant 0 : i32
    %c0_i32_0 = arith.constant 0 : i32
    return %arg0, %c0_i32 : i32, i32
  }
  func.func @transform_2(%arg0: i32) -> (i32, i32) {
    %c0_i32 = arith.constant 0 : i32
    %c0_i32_0 = arith.constant 0 : i32
    return %arg0, %c0_i32 : i32, i32
  }
}

</mosaic_0001>

<llo_original>
// kernel: tpu_custom_call.1
$region0: #{tpu_custom_call.1}
  #allocation0 [shape = 'u32[]', space=smem, size = 0x4, offset = 0x4, fixed_abs, tag = 'smem constant byte address 0x4 - core index']
  #allocation1 [shape = 'u32[72,128]{1,0:T(1,128)}', space=vmem, size = 0x9000, scoped, tag = 'internal scratch']
  %s0 = inlined_call_operand.hbm [shape: f32[32,256], index: 0, kind: input, shape index: {}]
  %s1 = inlined_call_operand.hbm [shape: bf16[32,256], index: 1, kind: output, shape index: {0}]
  %s2 = inlined_call_operand.vmem [shape: f32[32,1], index: 2, kind: output, shape index: {1}]
  %3 = xla_tuple %s1, %s2
  %s4 = sld [smem:[#allocation0]]
  $region26: #{tpu_custom_call.1} parent=0
    _
  %s6 = ssub.s32 1, %s4
  %s7 = scalar_select 0, %s6, %s4
  $region1: #{tpu_custom_call.1} parent=0
    #allocation2 [shape = 'u8[32768]{0}', space=vmem, size = 0x8000, scoped, tag = 'input window, operand 0, single buffered']
    #allocation3 [shape = 's32[1]{0}', space=sflag, size = 0x4, scoped, tag = 'scoped memory for tpu_custom_call.1']
    #allocation4 [shape = 's32[1]{0}', space=sflag, size = 0x4, scoped, tag = 'scoped memory for tpu_custom_call.1']
    #allocation5 [shape = 'u8[16384]{0}', space=vmem, size = 0x4000, scoped, tag = 'output window, operand 0, single buffered']
    %8 = vsyncpa [#allocation3], 0
    %9 = vsyncpa [#allocation4], 0
    // Predicated region
    $region2: #{tpu_custom_call.1} parent=1 // pred_check
      _
    $region3: #{tpu_custom_call.1} parent=1 // pred_check_branch
      %11 = sbr.rel (0) target = $region5
    $region4: #{tpu_custom_call.1} parent=1 // pred_region
      %13 = vsyncadd [#allocation3], 0
      %s14 = sshll.u32 %s0, 4
      %s15 = int_to_ptr.hbm [resolvable:$true] %s14
      %s16 = sshll.u32 [#allocation2], 4
      %s17 = int_to_ptr.vmem [resolvable:$true] %s16
      %22 = dma.hbm_to_vmem [thread:$0]  %s15, 1024, %s17, [#allocation3], 256, 256, 16
    $region5: #{tpu_custom_call.1} parent=1 // pred_fallthru
      _
    // Predicated region
    $region6: #{tpu_custom_call.1} parent=1 // pred_check
      _
    $region7: #{tpu_custom_call.1} parent=1 // pred_check_branch
      %24 = sbr.rel (0) target = $region9
    $region8: #{tpu_custom_call.1} parent=1 // pred_region
      %26 = dma.done [#allocation3], 1024
    $region9: #{tpu_custom_call.1} parent=1 // pred_fallthru
      _
    %v27 = vld [vmem:[#allocation2] sm:$0xff]
    %v28 = vld [vmem:[#allocation2 + $0x8] sm:$0xff]
    %v29 = vld [vmem:[#allocation2 + $0x10] sm:$0xff]
    %v30 = vld [vmem:[#allocation2 + $0x18] sm:$0xff]
    %v31 = vld [vmem:[#allocation2 + $0x20] sm:$0xff]
    %v32 = vld [vmem:[#allocation2 + $0x28] sm:$0xff]
    %v33 = vld [vmem:[#allocation2 + $0x30] sm:$0xff]
    %v34 = vld [vmem:[#allocation2 + $0x38] sm:$0xff]
    %v35 = vand.u32 2147483647, %v27
    %v36 = vand.u32 2147483647, %v28
    %v37 = vand.u32 2147483647, %v29
    %v38 = vand.u32 2147483647, %v30
    %v39 = vand.u32 2147483647, %v31
    %v40 = vand.u32 2147483647, %v32
    %v41 = vand.u32 2147483647, %v33
    %v42 = vand.u32 2147483647, %v34
    %v43 = vmax.f32 %v35, %v36
    %44 = vmax.xlane.f32.xlu0 %v43
    %v45 = vpop.xlane.xlu0 %44
    %v46 = vmax.f32 %v37, %v38
    %47 = vmax.xlane.f32.xlu0 %v46
    %v48 = vpop.xlane.xlu0 %47
    %v49 = vmax.f32 %v39, %v40
    %50 = vmax.xlane.f32.xlu0 %v49
    %v51 = vpop.xlane.xlu0 %50
    %v52 = vmax.f32 %v41, %v42
    %53 = vmax.xlane.f32.xlu0 %v52
    %v54 = vpop.xlane.xlu0 %53
    %vm55 = vcmp.gt.f32.partialorder %v45, 0.0
    %vm56 = vcmp.gt.f32.partialorder %v48, 0.0
    %vm57 = vcmp.gt.f32.partialorder %v51, 0.0
    %vm58 = vcmp.gt.f32.partialorder %v54, 0.0
    %v59 = vsel %vm55, %v45, 1.0
    %v60 = vsel %vm56, %v48, 1.0
    %v61 = vsel %vm57, %v51, 1.0
    %v62 = vsel %vm58, %v54, 1.0
    %v63 = vrcp.pop %v59
    %v64 = vmul.f32 %v59, %v63
    %v65 = vsub.f32 1.0, %v64
    %v66 = vmul.f32 %v63, %v65
    %v67 = vadd.f32 %v63, %v66
    %vm68 = vweird.f32 %v59
    %vm69 = vweird.f32 %v63
    %vm70 = vmor %vm68, %vm69
    %v71 = vsel %vm70, %v63, %v67
    %v72 = vand.u32 2147483647, %v59
    %vm73 = vcmp.eq.f32.partialorder %v72, 8.507059e+37
    %v74 = vand.u32 %v59, 2147483648
    %v75 = vor.u32 1.1754944e-38, %v74
    %v76 = vsel %vm73, %v75, %v71
    %v77 = vmul.f32 127.0, %v76
    %v78 = vrcp.pop %v60
    %v79 = vmul.f32 %v60, %v78
    %v80 = vsub.f32 1.0, %v79
    %v81 = vmul.f32 %v78, %v80
    %v82 = vadd.f32 %v78, %v81
    %vm83 = vweird.f32 %v60
    %vm84 = vweird.f32 %v78
    %vm85 = vmor %vm83, %vm84
    %v86 = vsel %vm85, %v78, %v82
    %v87 = vand.u32 2147483647, %v60
    %vm88 = vcmp.eq.f32.partialorder %v87, 8.507059e+37
    %v89 = vand.u32 %v60, 2147483648
    %v90 = vor.u32 1.1754944e-38, %v89
    %v91 = vsel %vm88, %v90, %v86
    %v92 = vmul.f32 127.0, %v91
    %v93 = vrcp.pop %v61
    %v94 = vmul.f32 %v61, %v93
    %v95 = vsub.f32 1.0, %v94
    %v96 = vmul.f32 %v93, %v95
    %v97 = vadd.f32 %v93, %v96
    %vm98 = vweird.f32 %v61
    %vm99 = vweird.f32 %v93
    %vm100 = vmor %vm98, %vm99
    %v101 = vsel %vm100, %v93, %v97
    %v102 = vand.u32 2147483647, %v61
    %vm103 = vcmp.eq.f32.partialorder %v102, 8.507059e+37
    %v104 = vand.u32 %v61, 2147483648
    %v105 = vor.u32 1.1754944e-38, %v104
    %v106 = vsel %vm103, %v105, %v101
    %v107 = vmul.f32 127.0, %v106
    %v108 = vrcp.pop %v62
    %v109 = vmul.f32 %v62, %v108
    %v110 = vsub.f32 1.0, %v109
    %v111 = vmul.f32 %v108, %v110
    %v112 = vadd.f32 %v108, %v111
    %vm113 = vweird.f32 %v62
    %vm114 = vweird.f32 %v108
    %vm115 = vmor %vm113, %vm114
    %v116 = vsel %vm115, %v108, %v112
    %v117 = vand.u32 2147483647, %v62
    %vm118 = vcmp.eq.f32.partialorder %v117, 8.507059e+37
    %v119 = vand.u32 %v62, 2147483648
    %v120 = vor.u32 1.1754944e-38, %v119
    %v121 = vsel %vm118, %v120, %v116
    %v122 = vmul.f32 127.0, %v121
    %v123 = vmul.f32 %v27, %v77
    %v124 = vmul.f32 %v28, %v77
    %v125 = vmul.f32 %v29, %v92
    %v126 = vmul.f32 %v30, %v92
    %v127 = vmul.f32 %v31, %v107
    %v128 = vmul.f32 %v32, %v107
    %v129 = vmul.f32 %v33, %v122
    %v130 = vmul.f32 %v34, %v122
    %v131 = vround.ne.pseudo %v123
    %v132 = vround.ne.pseudo %v124
    %v133 = vround.ne.pseudo %v125
    %v134 = vround.ne.pseudo %v126
    %v135 = vround.ne.pseudo %v127
    %v136 = vround.ne.pseudo %v128
    %v137 = vround.ne.pseudo %v129
    %v138 = vround.ne.pseudo %v130
    %v139 = vpack.c.bf16 %v132, %v131
    %v140 = vpack.c.bf16 %v134, %v133
    %v141 = vpack.c.bf16 %v136, %v135
    %v142 = vpack.c.bf16 %v138, %v137
    %143 = vst [vmem:[#allocation5] sm:$0xff] %v139
    %144 = vst [vmem:[#allocation5 + $0x8] sm:$0xff] %v140
    %145 = vst [vmem:[#allocation5 + $0x10] sm:$0xff] %v141
    %146 = vst [vmem:[#allocation5 + $0x18] sm:$0xff] %v142
    %v147 = vmul.f32 %v45, 0.007874016
    %v148 = vmul.f32 %v48, 0.007874016
    %v149 = vmul.f32 %v51, 0.007874016
    %v150 = vmul.f32 %v54, 0.007874016
    %vm151 = vcmask 7168
    %152 = vst.msk [vmem:[%s2] sm:$0xff] %vm151, %v147
    %153 = vst.msk [vmem:[%s2 + $0x8] sm:$0xff] %vm151, %v148
    %154 = vst.msk [vmem:[%s2 + $0x10] sm:$0xff] %vm151, %v149
    %155 = vst.msk [vmem:[%s2 + $0x18] sm:$0xff] %vm151, %v150
    // Predicated region
    $region10: #{tpu_custom_call.1} parent=1 // pred_check
      _
    $region11: #{tpu_custom_call.1} parent=1 // pred_check_branch
      %157 = sbr.rel (0) target = $region13
    $region12: #{tpu_custom_call.1} parent=1 // pred_region
      %159 = vsyncadd [#allocation4], 0
      %s160 = sshll.u32 [#allocation5], 4
      %s161 = int_to_ptr.vmem [resolvable:$true] %s160
      %s162 = sshll.u32 %s1, 4
      %s163 = int_to_ptr.hbm [resolvable:$true] %s162
      %168 = dma.vmem_to_hbm [thread:$0]  %s161, 512, %s163, [#allocation4], 128, 128, 8
    $region13: #{tpu_custom_call.1} parent=1 // pred_fallthru
      _
    // Predicated region
    $region14: #{tpu_custom_call.1} parent=1 // pred_check
      _
    $region15: #{tpu_custom_call.1} parent=1 // pred_check_branch
      %170 = sbr.rel (0) target = $region17
    $region16: #{tpu_custom_call.1} parent=1 // pred_region
      _
    $region17: #{tpu_custom_call.1} parent=1 // pred_fallthru
      _
    // Predicated region
    $region18: #{tpu_custom_call.1} parent=1 // pred_check
      _
    $region19: #{tpu_custom_call.1} parent=1 // pred_check_branch
      %172 = sbr.rel (0) target = $region21
    $region20: #{tpu_custom_call.1} parent=1 // pred_region
      %174 = dma.done [#allocation4], 512
    $region21: #{tpu_custom_call.1} parent=1 // pred_fallthru
      _
    // Predicated region
    $region22: #{tpu_custom_call.1} parent=1 // pred_check
      _
    $region23: #{tpu_custom_call.1} parent=1 // pred_check_branch
      %176 = sbr.rel (0) target = $region25
    $region24: #{tpu_custom_call.1} parent=1 // pred_region
      _
    $region25: #{tpu_custom_call.1} parent=1 // pred_fallthru
      _
    %177 = vsyncpa [#allocation3], 1
    %178 = vsyncpa [#allocation4], 1

</llo_original>
